<compile_context>
chip_gen: v7x
topology: tpu7x:2x2x1
jax: 0.10.0
libtpu: 0.0.40
codegen_flags: <defaults>
</compile_context>

<pallas_src>
import math
from functools import partial

import jax
import jax.numpy as jnp
from jax import lax
from jax.experimental import pallas as pl
from jax.experimental.pallas import tpu as pltpu

_INV_SQRT2 = 1.0 / math.sqrt(2.0)
_LANE = 128
_SUBLANE = 8
_MAX_TM = 256                            # max LHS row tile fed to the MXU
_VMEM_LIMIT_BYTES = 32 * 1024 * 1024     # explicit scoped-VMEM limit (v7x-safe)
_FUSED_VMEM_BUDGET = 20 * 1024 * 1024    # only fuse if everything fits w/ headroom


def _round_up(x, m):
    return -(-x // m) * m


def _gelu_exact_f32(y):
    # Exact GELU: 0.5 * y * (1 + erf(y / sqrt(2))).  Kept exact to match
    # nn.GELU() default; tanh-approx GELU (EUP-only) is a drop-in if allowed.
    return 0.5 * y * (1.0 + lax.erf(y * _INV_SQRT2))


# ----------------------------------------------------------------------------
# Fused multi-layer kernel: all layers for one row tile, activations in VMEM.
# ----------------------------------------------------------------------------
def _make_fused_kernel(num_layers):
    def kernel(*refs):
        # refs: x_ref, (w0, b0), ..., (w_{L-1}, b_{L-1}), o_ref
        x_ref = refs[0]
        o_ref = refs[1 + 2 * num_layers]
        h = x_ref[...]                                   # bf16 (tm, K0)
        for l in range(num_layers):
            w_ref = refs[1 + 2 * l]                      # bf16 (K_l, N_l)
            b_ref = refs[2 + 2 * l]                      # f32  (1, N_l)
            y = jnp.dot(h, w_ref[...], preferred_element_type=jnp.float32)
            y = y + b_ref[...]
            y = _gelu_exact_f32(y)
            # TODO(synk): training-mode dropout (Bernoulli mask / (1-p))
            # omitted — inference semantics (identity) are implemented.
            h = y.astype(o_ref.dtype)                    # bf16 for next matmul
        o_ref[...] = h
    return kernel


def _mlp_fused(x, prepared, *, tm):
    """x: (M_pad, K0_pad) bf16; prepared: [(w (K,N) bf16, b (1,N) f32), ...]."""
    m_pad, k0 = x.shape
    num_layers = len(prepared)
    n_last = prepared[-1][0].shape[1]

    in_specs = [pl.BlockSpec((tm, k0), lambda i: (i, 0))]
    args = [x]
    for w, b in prepared:
        kp, npad = w.shape
        in_specs.append(pl.BlockSpec((kp, npad), lambda i: (0, 0)))
        in_specs.append(pl.BlockSpec((1, npad), lambda i: (0, 0)))
        args.append(w)
        args.append(b)

    return pl.pallas_call(
        _make_fused_kernel(num_layers),
        out_shape=jax.ShapeDtypeStruct((m_pad, n_last), x.dtype),
        grid_spec=pltpu.PrefetchScalarGridSpec(
            num_scalar_prefetch=0,
            grid=(m_pad // tm,),
            in_specs=in_specs,
            out_specs=pl.BlockSpec((tm, n_last), lambda i: (i, 0)),
        ),
        compiler_params=pltpu.CompilerParams(
            dimension_semantics=("parallel",),
            vmem_limit_bytes=_VMEM_LIMIT_BYTES,
        ),
    )(*args)


def _fused_vmem_bytes(tm, k0_pad, prepared):
    """Rough VMEM footprint of the fused kernel (double-buffered BlockSpecs)."""
    cdt = jnp.dtype(prepared[0][0].dtype)
    total = 2 * tm * k0_pad * cdt.itemsize                       # x tile
    for w, b in prepared:
        total += 2 * (w.size * jnp.dtype(w.dtype).itemsize
                      + b.size * jnp.dtype(b.dtype).itemsize)    # resident params
    n_last = prepared[-1][0].shape[1]
    total += 2 * tm * n_last * cdt.itemsize                      # out tile
    max_n = max(w.shape[1] for w, _ in prepared)
    total += 2 * tm * max_n * 4                                  # f32 temporaries
    return total


# ----------------------------------------------------------------------------
# General tiled Linear + GELU kernel (fallback for layers too big to fuse).
# ----------------------------------------------------------------------------
def _linear_gelu_kernel(x_ref, w_ref, b_ref, o_ref, acc_ref):
    k = pl.program_id(2)

    @pl.when(k == 0)
    def _():
        acc_ref[...] = jnp.zeros_like(acc_ref)

    acc_ref[...] += jnp.dot(x_ref[...], w_ref[...],
                            preferred_element_type=jnp.float32)

    @pl.when(k == pl.num_programs(2) - 1)
    def _():
        y = acc_ref[...] + b_ref[...]
        # TODO(synk): training-mode dropout omitted — eval-mode identity.
        o_ref[...] = _gelu_exact_f32(y).astype(o_ref.dtype)


def _linear_gelu_tiled(x, w, b, *, tm):
    """x: (M, K) bf16, w: (K, N) bf16, b: (1, N) f32 -> (M, N) bf16."""
    M, K = x.shape
    K2, N = w.shape
    assert K == K2 and M % tm == 0 and K % _LANE == 0 and N % _LANE == 0
    tn = 256 if N % 256 == 0 else _LANE
    tk = 512 if K % 512 == 0 else (256 if K % 256 == 0 else _LANE)
    grid = (M // tm, N // tn, K // tk)

    return pl.pallas_call(
        _linear_gelu_kernel,
        out_shape=jax.ShapeDtypeStruct((M, N), x.dtype),
        grid_spec=pltpu.PrefetchScalarGridSpec(
            num_scalar_prefetch=0,
            grid=grid,
            in_specs=[
                pl.BlockSpec((tm, tk), lambda i, j, k: (i, k)),
                pl.BlockSpec((tk, tn), lambda i, j, k: (k, j)),
                pl.BlockSpec((1, tn), lambda i, j, k: (0, j)),
            ],
            out_specs=pl.BlockSpec((tm, tn), lambda i, j, k: (i, j)),
            scratch_shapes=[pltpu.VMEM((tm, tn), jnp.float32)],
        ),
        compiler_params=pltpu.CompilerParams(
            dimension_semantics=("parallel", "parallel", "arbitrary"),
            vmem_limit_bytes=_VMEM_LIMIT_BYTES,
        ),
    )(x, w, b)


# ----------------------------------------------------------------------------
# Parameter setup (done ONCE, outside the forward pass).
# ----------------------------------------------------------------------------
def init_mlp_params(key, input_size, hidden_size):
    """PyTorch-style init: uniform +/- 1/sqrt(fan_in), weights (out, in)."""
    params = []
    prev = input_size
    for h in hidden_size:
        key, kw, kb = jax.random.split(key, 3)
        bound = 1.0 / math.sqrt(prev)
        w = jax.random.uniform(kw, (h, prev), jnp.float32, -bound, bound)
        b = jax.random.uniform(kb, (h,), jnp.float32, -bound, bound)
        params.append((w, b))
        prev = h
    return params


def prepare_mlp_params(params, compute_dtype=jnp.bfloat16):
    """Transpose to (in, out), zero-pad to lane-aligned shapes, cast to bf16.

    Padding is exact: padded weight rows/cols are zero and GELU(0) = 0, so
    padded activation columns stay exactly zero through every layer.
    """
    prepared = []
    for w, b in params:
        out_f, in_f = w.shape
        k_pad = _round_up(in_f, _LANE)
        n_pad = _round_up(out_f, _LANE)
        w_t = jnp.zeros((k_pad, n_pad), compute_dtype)
        w_t = w_t.at[:in_f, :out_f].set(w.T.astype(compute_dtype))
        b_p = jnp.zeros((1, n_pad), jnp.float32)
        b_p = b_p.at[0, :out_f].set(b.astype(jnp.float32))
        prepared.append((w_t, b_p))
    return prepared


# ----------------------------------------------------------------------------
# Forward pass.
# ----------------------------------------------------------------------------
@partial(jax.jit, static_argnames=("out_features", "force_tiled"))
def mlp_forward(x, prepared_params, *, out_features, force_tiled=False):
    """x: (..., input_size) f32 -> (..., out_features) f32."""
    orig_shape = x.shape
    feat = orig_shape[-1]
    compute_dtype = prepared_params[0][0].dtype
    k0_pad = prepared_params[0][0].shape[0]

    x2 = x.reshape(-1, feat).astype(compute_dtype)
    M = x2.shape[0]
    tm = min(_MAX_TM, _round_up(M, _SUBLANE))
    m_pad = _round_up(M, tm)
    x2 = jnp.pad(x2, ((0, m_pad - M), (0, k0_pad - feat)))

    use_fused = (not force_tiled) and (
        _fused_vmem_bytes(tm, k0_pad, prepared_params) <= _FUSED_VMEM_BUDGET)

    if use_fused:
        y = _mlp_fused(x2, prepared_params, tm=tm)
    else:
        y = x2
        for w, b in prepared_params:
            y = _linear_gelu_tiled(y, w, b, tm=tm)

    y = y[:M, :out_features].astype(x.dtype)
    return y.reshape(orig_shape[:-1] + (out_features,))


# ----------------------------------------------------------------------------
# References.
# ----------------------------------------------------------------------------
def _reference_mlp_f32(x, params):
    """Pure-JAX f32 reference (exact GELU, eval-mode dropout)."""
    y = x
    for w, b in params:
        y = y @ w.T + b
        y = _gelu_exact_f32(y)
    return y


def _reference_mlp_matched(x, params, compute_dtype=jnp.bfloat16):
    """Reference using the same bf16-operand / f32-accumulate recipe as the kernel."""
    y = x.astype(compute_dtype)
    for w, b in params:
        z = jnp.dot(y, w.T.astype(compute_dtype),
                    preferred_element_type=jnp.float32) + b
        z = _gelu_exact_f32(z)
        y = z.astype(compute_dtype)
    return y.astype(x.dtype)


if __name__ == "__main__":
    key = jax.random.PRNGKey(0)

    # Small vision-transformer-like shapes: batch=2, seq=8, embed dim=32.
    B, S, D = 2, 8, 32
    hidden_size = [128, 64]

    kx, kp = jax.random.split(key)
    x = jax.random.normal(kx, (B, S, D), jnp.float32)
    params = init_mlp_params(kp, D, hidden_size)
    prepared = prepare_mlp_params(params)       # transpose + pad + bf16, ONCE

    ref_f32 = _reference_mlp_f32(x, params)
    ref_matched = _reference_mlp_matched(x, params)

    # Fused path (taken automatically for these sizes).
    out = mlp_forward(x, prepared, out_features=hidden_size[-1])
    out = jax.block_until_ready(out)
    assert out.shape == (B, S, hidden_size[-1]), out.shape
    assert jnp.allclose(out, ref_matched, atol=1e-2, rtol=1e-2), float(
        jnp.max(jnp.abs(out - ref_matched)))
    assert jnp.allclose(out, ref_f32, atol=1e-1, rtol=1e-1), float(
        jnp.max(jnp.abs(out - ref_f32)))

    # Also exercise the general tiled fallback path.
    out_t = mlp_forward(x, prepared, out_features=hidden_size[-1],
                        force_tiled=True)
    out_t = jax.block_until_ready(out_t)
    assert out_t.shape == (B, S, hidden_size[-1]), out_t.shape
    assert jnp.allclose(out_t, ref_matched, atol=1e-2, rtol=1e-2), float(
        jnp.max(jnp.abs(out_t - ref_matched)))
    assert jnp.allclose(out_t, ref_f32, atol=1e-1, rtol=1e-1), float(
        jnp.max(jnp.abs(out_t - ref_f32)))

    print("KERNEL_OK")
</pallas_src>

<mosaic_0001>
module attributes {stable_mosaic.version = 11 : i64} {
  func.func @kernel(%arg0: i32, %arg1: memref<16x128xbf16, #tpu.memory_space<vmem>>, %arg2: memref<128x128xbf16, #tpu.memory_space<vmem>>, %arg3: memref<1x128xf32, #tpu.memory_space<vmem>>, %arg4: memref<128x128xbf16, #tpu.memory_space<vmem>>, %arg5: memref<1x128xf32, #tpu.memory_space<vmem>>, %arg6: memref<16x128xbf16, #tpu.memory_space<vmem>>) attributes {dimension_semantics = [#tpu.dimension_semantics<parallel>], iteration_bounds = array<i64: 1>, scalar_prefetch = 0 : i64, scratch_operands = 0 : i64, tpu.core_type = #tpu.core_type<tc>, window_params = [{transform_indices = @transform_0, window_bounds = array<i64: 16, 128>}, {pipeline_mode = #tpu.pipeline_mode<synchronous>, transform_indices = @transform_1, window_bounds = array<i64: 128, 128>}, {pipeline_mode = #tpu.pipeline_mode<synchronous>, transform_indices = @transform_2, window_bounds = array<i64: 1, 128>}, {pipeline_mode = #tpu.pipeline_mode<synchronous>, transform_indices = @transform_3, window_bounds = array<i64: 128, 128>}, {pipeline_mode = #tpu.pipeline_mode<synchronous>, transform_indices = @transform_4, window_bounds = array<i64: 1, 128>}, {transform_indices = @transform_5, window_bounds = array<i64: 16, 128>}]} {
    %c0 = arith.constant 0 : index
    %c0_0 = arith.constant 0 : index
    %0 = vector.load %arg1[%c0, %c0_0] : memref<16x128xbf16, #tpu.memory_space<vmem>>, vector<16x128xbf16>
    %c0_1 = arith.constant 0 : index
    %c0_2 = arith.constant 0 : index
    %1 = vector.load %arg2[%c0_1, %c0_2] : memref<128x128xbf16, #tpu.memory_space<vmem>>, vector<128x128xbf16>
    %cst = arith.constant dense<0.000000e+00> : vector<16x128xf32>
    %2 = tpu.matmul %0, %1, %cst {dimension_numbers = #tpu.dot_dimension_numbers<[1], [0], [0], [1], [0, 0, 1, 1], [], []>} : vector<16x128xbf16>, vector<128x128xbf16>, vector<16x128xf32> -> vector<16x128xf32>
    %c0_3 = arith.constant 0 : index
    %c0_4 = arith.constant 0 : index
    %3 = vector.load %arg3[%c0_3, %c0_4] : memref<1x128xf32, #tpu.memory_space<vmem>>, vector<1x128xf32>
    %4 = vector.broadcast %3 : vector<1x128xf32> to vector<16x128xf32>
    %5 = arith.addf %2, %4 : vector<16x128xf32>
    %cst_5 = arith.constant 5.000000e-01 : f32
    %6 = vector.broadcast %cst_5 : f32 to vector<16x128xf32>
    %7 = arith.mulf %6, %5 : vector<16x128xf32>
    %cst_6 = arith.constant 0.707106769 : f32
    %8 = vector.broadcast %cst_6 : f32 to vector<16x128xf32>
    %9 = arith.mulf %5, %8 : vector<16x128xf32>
    %10 = math.erf %9 : vector<16x128xf32>
    %cst_7 = arith.constant 1.000000e+00 : f32
    %11 = vector.broadcast %cst_7 : f32 to vector<16x128xf32>
    %12 = arith.addf %11, %10 : vector<16x128xf32>
    %13 = arith.mulf %7, %12 : vector<16x128xf32>
    %14 = arith.truncf %13 : vector<16x128xf32> to vector<16x128xbf16>
    %c0_8 = arith.constant 0 : index
    %c0_9 = arith.constant 0 : index
    %15 = vector.load %arg4[%c0_8, %c0_9] : memref<128x128xbf16, #tpu.memory_space<vmem>>, vector<128x128xbf16>
    %cst_10 = arith.constant dense<0.000000e+00> : vector<16x128xf32>
    %16 = tpu.matmul %14, %15, %cst_10 {dimension_numbers = #tpu.dot_dimension_numbers<[1], [0], [0], [1], [0, 0, 1, 1], [], []>} : vector<16x128xbf16>, vector<128x128xbf16>, vector<16x128xf32> -> vector<16x128xf32>
    %c0_11 = arith.constant 0 : index
    %c0_12 = arith.constant 0 : index
    %17 = vector.load %arg5[%c0_11, %c0_12] : memref<1x128xf32, #tpu.memory_space<vmem>>, vector<1x128xf32>
    %18 = vector.broadcast %17 : vector<1x128xf32> to vector<16x128xf32>
    %19 = arith.addf %16, %18 : vector<16x128xf32>
    %cst_13 = arith.constant 5.000000e-01 : f32
    %20 = vector.broadcast %cst_13 : f32 to vector<16x128xf32>
    %21 = arith.mulf %20, %19 : vector<16x128xf32>
    %cst_14 = arith.constant 0.707106769 : f32
    %22 = vector.broadcast %cst_14 : f32 to vector<16x128xf32>
    %23 = arith.mulf %19, %22 : vector<16x128xf32>
    %24 = math.erf %23 : vector<16x128xf32>
    %cst_15 = arith.constant 1.000000e+00 : f32
    %25 = vector.broadcast %cst_15 : f32 to vector<16x128xf32>
    %26 = arith.addf %25, %24 : vector<16x128xf32>
    %27 = arith.mulf %21, %26 : vector<16x128xf32>
    %28 = arith.truncf %27 : vector<16x128xf32> to vector<16x128xbf16>
    %c0_16 = arith.constant 0 : index
    %c0_17 = arith.constant 0 : index
    %29 = vector.load %arg6[%c0_16, %c0_17] : memref<16x128xbf16, #tpu.memory_space<vmem>>, vector<16x128xbf16>
    tpu.vector_store %arg6[%c0_16, %c0_17], %28 {strides = array<i32>} : memref<16x128xbf16, #tpu.memory_space<vmem>>, vector<16x128xbf16>,
    return
  }
  func.func @transform_0(%arg0: i32) -> (i32, i32) {
    %c0_i32 = arith.constant 0 : i32
    %c0_i32_0 = arith.constant 0 : i32
    return %arg0, %c0_i32 : i32, i32
  }
  func.func @transform_1(%arg0: i32) -> (i32, i32) {
    %c0_i32 = arith.constant 0 : i32
    %c0_i32_0 = arith.constant 0 : i32
    %c0_i32_1 = arith.constant 0 : i32
    return %c0_i32, %c0_i32_0 : i32, i32
  }
  func.func @transform_2(%arg0: i32) -> (i32, i32) {
    %c0_i32 = arith.constant 0 : i32
    %c0_i32_0 = arith.constant 0 : i32
    %c0_i32_1 = arith.constant 0 : i32
    return %c0_i32, %c0_i32_0 : i32, i32
  }
  func.func @transform_3(%arg0: i32) -> (i32, i32) {
    %c0_i32 = arith.constant 0 : i32
    %c0_i32_0 = arith.constant 0 : i32
    %c0_i32_1 = arith.constant 0 : i32
    return %c0_i32, %c0_i32_0 : i32, i32
  }
  func.func @transform_4(%arg0: i32) -> (i32, i32) {
    %c0_i32 = arith.constant 0 : i32
    %c0_i32_0 = arith.constant 0 : i32
    %c0_i32_1 = arith.constant 0 : i32
    return %c0_i32, %c0_i32_0 : i32, i32
  }
  func.func @transform_5(%arg0: i32) -> (i32, i32) {
    %c0_i32 = arith.constant 0 : i32
    %c0_i32_0 = arith.constant 0 : i32
    return %arg0, %c0_i32 : i32, i32
  }
}

</mosaic_0001>

<llo_original>
// kernel: mlp_forward.1
$region0: #{mlp_forward.1}
  #allocation0 [shape = 'u32[]', space=smem, size = 0x4, offset = 0x4, fixed_abs, tag = 'smem constant byte address 0x4 - core index']
  #allocation1 [shape = 'u32[144,128]{1,0:T(1,128)}', space=vmem, size = 0x12000, scoped, tag = 'internal scratch']
  %s0 = inlined_call_operand.vmem [shape: bf16[16,128], index: 0, kind: input, shape index: {}]
  %s1 = inlined_call_operand.hbm [shape: bf16[128,128], index: 1, kind: input, shape index: {}]
  %s2 = inlined_call_operand.vmem [shape: f32[1,128], index: 2, kind: input, shape index: {}]
  %s3 = inlined_call_operand.hbm [shape: bf16[128,128], index: 3, kind: input, shape index: {}]
  %s4 = inlined_call_operand.vmem [shape: f32[1,128], index: 4, kind: input, shape index: {}]
  %s5 = inlined_call_operand.vmem [shape: bf16[16,128], index: 5, kind: output, shape index: {}]
  %s6 = sld [smem:[#allocation0]]
  $region38: #{mlp_forward.1} parent=0
    _
  %s8 = ssub.s32 1, %s6
  %s9 = scalar_select 0, %s8, %s6
  $region1: #{mlp_forward.1} parent=0
    #allocation2 [shape = 'u8[32768]{0}', space=vmem, size = 0x8000, scoped, tag = 'input window, operand 1, single buffered']
    #allocation3 [shape = 's32[1]{0}', space=sflag, size = 0x4, scoped, tag = 'scoped memory for mlp_forward.1']
    #allocation4 [shape = 'u8[32768]{0}', space=vmem, size = 0x8000, scoped, tag = 'input window, operand 3, single buffered']
    #allocation5 [shape = 's32[1]{0}', space=sflag, size = 0x4, scoped, tag = 'scoped memory for mlp_forward.1']
    %10 = vsyncpa [#allocation3], 0
    %11 = vsyncpa [#allocation5], 0
    // Predicated region
    $region2: #{mlp_forward.1} parent=1 // pred_check
      _
    $region3: #{mlp_forward.1} parent=1 // pred_check_branch
      %13 = sbr.rel (0) target = $region5
    $region4: #{mlp_forward.1} parent=1 // pred_region
      _
    $region5: #{mlp_forward.1} parent=1 // pred_fallthru
      _
    // Predicated region
    $region6: #{mlp_forward.1} parent=1 // pred_check
      _
    $region7: #{mlp_forward.1} parent=1 // pred_check_branch
      %15 = sbr.rel (0) target = $region9
    $region8: #{mlp_forward.1} parent=1 // pred_region
      %s17 = ssub.s32 1024, 1024
      %18 = vsyncadd [#allocation3], %s17
      %s19 = sshll.u32 [#allocation2], 4
      %s20 = int_to_ptr.vmem [resolvable:$true] %s19
      %25 = dma.hbm_to_vmem [thread:$0]  %s1, 1024, %s20, [#allocation3], 64, 64, 4
    $region9: #{mlp_forward.1} parent=1 // pred_fallthru
      _
    // Predicated region
    $region10: #{mlp_forward.1} parent=1 // pred_check
      _
    $region11: #{mlp_forward.1} parent=1 // pred_check_branch
      %27 = sbr.rel (0) target = $region13
    $region12: #{mlp_forward.1} parent=1 // pred_region
      _
    $region13: #{mlp_forward.1} parent=1 // pred_fallthru
      _
    // Predicated region
    $region14: #{mlp_forward.1} parent=1 // pred_check
      _
    $region15: #{mlp_forward.1} parent=1 // pred_check_branch
      %29 = sbr.rel (0) target = $region17
    $region16: #{mlp_forward.1} parent=1 // pred_region
      %s31 = ssub.s32 1024, 1024
      %32 = vsyncadd [#allocation5], %s31
      %s33 = sshll.u32 [#allocation4], 4
      %s34 = int_to_ptr.vmem [resolvable:$true] %s33
      %39 = dma.hbm_to_vmem [thread:$0]  %s3, 1024, %s34, [#allocation5], 64, 64, 4
    $region17: #{mlp_forward.1} parent=1 // pred_fallthru
      _
    // Predicated region
    $region18: #{mlp_forward.1} parent=1 // pred_check
      _
    $region19: #{mlp_forward.1} parent=1 // pred_check_branch
      %41 = sbr.rel (0) target = $region21
    $region20: #{mlp_forward.1} parent=1 // pred_region
      _
    $region21: #{mlp_forward.1} parent=1 // pred_fallthru
      _
    // Predicated region
    $region22: #{mlp_forward.1} parent=1 // pred_check
      _
    $region23: #{mlp_forward.1} parent=1 // pred_check_branch
      %43 = sbr.rel (0) target = $region25
    $region24: #{mlp_forward.1} parent=1 // pred_region
      %44 = dma.done [#allocation3], 1024
    $region25: #{mlp_forward.1} parent=1 // pred_fallthru
      _
    // Predicated region
    $region26: #{mlp_forward.1} parent=1 // pred_check
      _
    $region27: #{mlp_forward.1} parent=1 // pred_check_branch
      %46 = sbr.rel (0) target = $region29
    $region28: #{mlp_forward.1} parent=1 // pred_region
      %47 = dma.done [#allocation5], 1024
    $region29: #{mlp_forward.1} parent=1 // pred_fallthru
      _
    %v49 = vld [vmem:[%s0] sm:$0xf]
    %v50 = vld [vmem:[%s0 + $0x4] sm:$0xf]
    %v51 = vld [vmem:[#allocation2] sm:$0xf]
    %v52 = vld [vmem:[#allocation2 + $0x4] sm:$0xf]
    %v53 = vld [vmem:[#allocation2 + $0x8] sm:$0xf]
    %v54 = vld [vmem:[#allocation2 + $0xc] sm:$0xf]
    %v55 = vld [vmem:[#allocation2 + $0x10] sm:$0xf]
    %v56 = vld [vmem:[#allocation2 + $0x14] sm:$0xf]
    %v57 = vld [vmem:[#allocation2 + $0x18] sm:$0xf]
    %v58 = vld [vmem:[#allocation2 + $0x1c] sm:$0xf]
    %v59 = vld [vmem:[#allocation2 + $0x20] sm:$0xf]
    %v60 = vld [vmem:[#allocation2 + $0x24] sm:$0xf]
    %v61 = vld [vmem:[#allocation2 + $0x28] sm:$0xf]
    %v62 = vld [vmem:[#allocation2 + $0x2c] sm:$0xf]
    %v63 = vld [vmem:[#allocation2 + $0x30] sm:$0xf]
    %v64 = vld [vmem:[#allocation2 + $0x34] sm:$0xf]
    %v65 = vld [vmem:[#allocation2 + $0x38] sm:$0xf]
    %v66 = vld [vmem:[#allocation2 + $0x3c] sm:$0xf]
    %v67 = vld [vmem:[%s2] sm:$0x1]
    %v69 = vlaneseq
    %v70 = vshrl.u32 %v69, 7
    %v71 = vsub.s32 0, %v70
    %v72 = vrot.slane %v67, %v71
    %v76 = vunpack.c.l.b16 %v49
    %v77 = vunpack.c.l.b16 %v50
    %v78 = vpack.c.b16 %v77, %v76
    %v96 = vunpack.c.l.b16 %v51
    %v97 = vunpack.c.l.b16 %v52
    %v98 = vunpack.c.l.b16 %v53
    %v99 = vunpack.c.l.b16 %v54
    %v100 = vunpack.c.l.b16 %v55
    %v101 = vunpack.c.l.b16 %v56
    %v102 = vunpack.c.l.b16 %v57
    %v103 = vunpack.c.l.b16 %v58
    %v104 = vunpack.c.l.b16 %v59
    %v105 = vunpack.c.l.b16 %v60
    %v106 = vunpack.c.l.b16 %v61
    %v107 = vunpack.c.l.b16 %v62
    %v108 = vunpack.c.l.b16 %v63
    %v109 = vunpack.c.l.b16 %v64
    %v110 = vunpack.c.l.b16 %v65
    %v111 = vunpack.c.l.b16 %v66
    %v112 = vpack.c.b16 %v97, %v96
    %v113 = vpack.c.b16 %v99, %v98
    %v114 = vpack.c.b16 %v101, %v100
    %v115 = vpack.c.b16 %v103, %v102
    %v116 = vpack.c.b16 %v105, %v104
    %v117 = vpack.c.b16 %v107, %v106
    %v118 = vpack.c.b16 %v109, %v108
    %v119 = vpack.c.b16 %v111, %v110
    %128 = vmatprep.subr.bf16.mxu0 0
    %129 = vmatpush1.bf16.msra.mxu0 %v112
    %130 = vmatprep.subr.bf16.mxu0 0
    %131 = vmatpush1.bf16.msra.mxu0 %v113
    %132 = vmatprep.subr.bf16.mxu0 0
    %133 = vmatpush1.bf16.msra.mxu0 %v114
    %134 = vmatprep.subr.bf16.mxu0 0
    %135 = vmatpush1.bf16.msra.mxu0 %v115
    %136 = vmatprep.subr.bf16.mxu0 0
    %137 = vmatpush1.bf16.msra.mxu0 %v116
    %138 = vmatprep.subr.bf16.mxu0 0
    %139 = vmatpush1.bf16.msra.mxu0 %v117
    %140 = vmatprep.subr.bf16.mxu0 0
    %141 = vmatpush1.bf16.msra.mxu0 %v118
    %142 = vmatprep.subr.bf16.mxu0 0
    %143 = vmatpush1.bf16.msra.mxu0 %v119
    %144 = vmatprep.subr.bf16.mxu0 0
    %145 = vmatpush1.bf16.msra.mxu0 0
    %146 = vmatprep.subr.bf16.mxu0 0
    %147 = vmatpush1.bf16.msra.mxu0 0
    %148 = vmatprep.subr.bf16.mxu0 0
    %149 = vmatpush1.bf16.msra.mxu0 0
    %150 = vmatprep.subr.bf16.mxu0 0
    %151 = vmatpush1.bf16.msra.mxu0 0
    %152 = vmatprep.subr.bf16.mxu0 0
    %153 = vmatpush1.bf16.msra.mxu0 0
    %154 = vmatprep.subr.bf16.mxu0 0
    %155 = vmatpush1.bf16.msra.mxu0 0
    %156 = vmatprep.subr.bf16.mxu0 0
    %157 = vmatpush1.bf16.msra.mxu0 0
    %158 = vmatprep.subr.bf16.mxu0 0
    %159 = vmatpush1.bf16.msra.mxu0 0
    %160 = vmatprep.mubr.bf16.mxu0 0
    %161 = vmatmul.mubr.bf16.gmra.mrb[0].mxu0 %v78
    %v162 = vpop.f32.mrb[0].mxu0
    %v163 = vadd.f32 %v72, %v162
    %v164 = vpop.f32.mrb[0].mxu0
    %v165 = vpop.f32.mrb[0].mxu0
    %v166 = vadd.f32 %v72, %v165
    %v167 = vpop.f32.mrb[0].mxu0
    %168 = vdwg.mxu0
    %v169 = vmul.f32 %v163, 0.5
    %v170 = vmul.f32 %v166, 0.5
    %v171 = vmul.f32 %v163, 0.70710677
    %v172 = vmul.f32 %v166, 0.70710677
    %v173 = verf.f32.pop %v171
    %v174 = verf.f32.pop %v172
    %v175 = vadd.f32 %v173, 1.0
    %v176 = vadd.f32 %v174, 1.0
    %v177 = vmul.f32 %v169, %v175
    %v178 = vmul.f32 %v170, %v176
    %v179 = vpack.c.bf16 %v178, %v177
    %v180 = vld [vmem:[#allocation4] sm:$0xf]
    %v181 = vld [vmem:[#allocation4 + $0x4] sm:$0xf]
    %v182 = vld [vmem:[#allocation4 + $0x8] sm:$0xf]
    %v183 = vld [vmem:[#allocation4 + $0xc] sm:$0xf]
    %v184 = vld [vmem:[#allocation4 + $0x10] sm:$0xf]
    %v185 = vld [vmem:[#allocation4 + $0x14] sm:$0xf]
    %v186 = vld [vmem:[#allocation4 + $0x18] sm:$0xf]
    %v187 = vld [vmem:[#allocation4 + $0x1c] sm:$0xf]
    %v188 = vld [vmem:[#allocation4 + $0x20] sm:$0xf]
    %v189 = vld [vmem:[#allocation4 + $0x24] sm:$0xf]
    %v190 = vld [vmem:[#allocation4 + $0x28] sm:$0xf]
    %v191 = vld [vmem:[#allocation4 + $0x2c] sm:$0xf]
    %v192 = vld [vmem:[#allocation4 + $0x30] sm:$0xf]
    %v193 = vld [vmem:[#allocation4 + $0x34] sm:$0xf]
    %v194 = vld [vmem:[#allocation4 + $0x38] sm:$0xf]
    %v195 = vld [vmem:[#allocation4 + $0x3c] sm:$0xf]
    %v196 = vld [vmem:[%s4] sm:$0x1]
    %v198 = vlaneseq
    %v199 = vshrl.u32 %v198, 7
    %v200 = vsub.s32 0, %v199
    %v201 = vrot.slane %v196, %v200
    %v219 = vunpack.c.l.b16 %v180
    %v220 = vunpack.c.l.b16 %v181
    %v221 = vunpack.c.l.b16 %v182
    %v222 = vunpack.c.l.b16 %v183
    %v223 = vunpack.c.l.b16 %v184
    %v224 = vunpack.c.l.b16 %v185
    %v225 = vunpack.c.l.b16 %v186
    %v226 = vunpack.c.l.b16 %v187
    %v227 = vunpack.c.l.b16 %v188
    %v228 = vunpack.c.l.b16 %v189
    %v229 = vunpack.c.l.b16 %v190
    %v230 = vunpack.c.l.b16 %v191
    %v231 = vunpack.c.l.b16 %v192
    %v232 = vunpack.c.l.b16 %v193
    %v233 = vunpack.c.l.b16 %v194
    %v234 = vunpack.c.l.b16 %v195
    %v235 = vpack.c.b16 %v220, %v219
    %v236 = vpack.c.b16 %v222, %v221
    %v237 = vpack.c.b16 %v224, %v223
    %v238 = vpack.c.b16 %v226, %v225
    %v239 = vpack.c.b16 %v228, %v227
    %v240 = vpack.c.b16 %v230, %v229
    %v241 = vpack.c.b16 %v232, %v231
    %v242 = vpack.c.b16 %v234, %v233
    %251 = vmatprep.subr.bf16.mxu0 0
    %252 = vmatpush1.bf16.msra.mxu0 %v235
    %253 = vmatprep.subr.bf16.mxu0 0
    %254 = vmatpush1.bf16.msra.mxu0 %v236
    %255 = vmatprep.subr.bf16.mxu0 0
    %256 = vmatpush1.bf16.msra.mxu0 %v237
    %257 = vmatprep.subr.bf16.mxu0 0
    %258 = vmatpush1.bf16.msra.mxu0 %v238
    %259 = vmatprep.subr.bf16.mxu0 0
    %260 = vmatpush1.bf16.msra.mxu0 %v239
    %261 = vmatprep.subr.bf16.mxu0 0
    %262 = vmatpush1.bf16.msra.mxu0 %v240
    %263 = vmatprep.subr.bf16.mxu0 0
    %264 = vmatpush1.bf16.msra.mxu0 %v241
    %265 = vmatprep.subr.bf16.mxu0 0
    %266 = vmatpush1.bf16.msra.mxu0 %v242
    %267 = vmatprep.subr.bf16.mxu0 0
    %268 = vmatpush1.bf16.msra.mxu0 0
    %269 = vmatprep.subr.bf16.mxu0 0
    %270 = vmatpush1.bf16.msra.mxu0 0
    %271 = vmatprep.subr.bf16.mxu0 0
    %272 = vmatpush1.bf16.msra.mxu0 0
    %273 = vmatprep.subr.bf16.mxu0 0
    %274 = vmatpush1.bf16.msra.mxu0 0
    %275 = vmatprep.subr.bf16.mxu0 0
    %276 = vmatpush1.bf16.msra.mxu0 0
    %277 = vmatprep.subr.bf16.mxu0 0
    %278 = vmatpush1.bf16.msra.mxu0 0
    %279 = vmatprep.subr.bf16.mxu0 0
    %280 = vmatpush1.bf16.msra.mxu0 0
    %281 = vmatprep.subr.bf16.mxu0 0
    %282 = vmatpush1.bf16.msra.mxu0 0
    %283 = vmatprep.mubr.bf16.mxu0 0
    %284 = vmatmul.mubr.bf16.gmra.mrb[0].mxu0 %v179
    %v285 = vpop.f32.mrb[0].mxu0
    %v286 = vadd.f32 %v201, %v285
    %v287 = vpop.f32.mrb[0].mxu0
    %v288 = vpop.f32.mrb[0].mxu0
    %v289 = vadd.f32 %v201, %v288
    %v290 = vpop.f32.mrb[0].mxu0
    %291 = vdwg.mxu0
    %v292 = vmul.f32 %v286, 0.5
    %v293 = vmul.f32 %v289, 0.5
    %v294 = vmul.f32 %v286, 0.70710677
    %v295 = vmul.f32 %v289, 0.70710677
    %v296 = verf.f32.pop %v294
    %v297 = verf.f32.pop %v295
    %v298 = vadd.f32 %v296, 1.0
    %v299 = vadd.f32 %v297, 1.0
    %v300 = vmul.f32 %v292, %v298
    %v301 = vmul.f32 %v293, %v299
    %v302 = vpack.c.bf16 %v301, %v300
    %v304 = vunpack.c.l.b16 %v302
    %v305 = vunpack.c.h.b16 %v302
    %v306 = vpack.c.b16 %v304, %v304
    %v307 = vpack.c.b16 %v305, %v305
    %310 = vst [vmem:[%s5] sm:$0xf] %v306
    %311 = vst [vmem:[%s5 + $0x4] sm:$0xf] %v307
    // Predicated region
    $region30: #{mlp_forward.1} parent=1 // pred_check
      _
    $region31: #{mlp_forward.1} parent=1 // pred_check_branch
      %313 = sbr.rel (0) target = $region33
    $region32: #{mlp_forward.1} parent=1 // pred_region
      _
    $region33: #{mlp_forward.1} parent=1 // pred_fallthru
      _
    // Predicated region
    $region34: #{mlp_forward.1} parent=1 // pred_check
      _
    $region35: #{mlp_forward.1} parent=1 // pred_check_branch
      %315 = sbr.rel (0) target = $region37
    $region36: #{mlp_forward.1} parent=1 // pred_region
      _
    $region37: #{mlp_forward.1} parent=1 // pred_fallthru
      _
    %316 = vsyncpa [#allocation3], 1
    %317 = vsyncpa [#allocation5], 1

</llo_original>
